<compile_context>
chip_gen: v7x
topology: tpu7x:2x2x1
jax: 0.10.0
libtpu: 0.0.40
codegen_flags: <defaults>
</compile_context>

<pallas_src>
import functools

import jax
import jax.numpy as jnp
from jax import lax
from jax.experimental import pallas as pl
from jax.experimental.pallas import tpu as pltpu


# Large finite negative: exp(mask - row_max) underflows to exactly 0.0 in f32,
# but avoids -inf/NaN hazards. The diagonal is always unmasked so row max is real.
_MASK_VALUE = -0.7 * float(jnp.finfo(jnp.float32).max)


def _causal_mask(scores, q_start, k_start):
    """Mask scores[r, c] where (k_start + c) > (q_start + r)."""
    row = q_start + lax.broadcasted_iota(jnp.int32, scores.shape, 0)
    col = k_start + lax.broadcasted_iota(jnp.int32, scores.shape, 1)
    return jnp.where(col > row, _MASK_VALUE, scores)


def _sdpa_dense_kernel(q_ref, k_ref, v_ref, ctx_ref, attn_ref, *, scale, tq):
    """Full-semantics kernel: writes both context and the (TQ, L) attention tile."""
    # q_ref: (1, TQ, D), k_ref: (1, L, D), v_ref: (1, L, Dv)
    fold_scale_into_q = q_ref.dtype == jnp.float32  # avoid pre-MXU rounding for bf16
    q = q_ref[0]
    if fold_scale_into_q:
        q = q * jnp.asarray(scale, dtype=q.dtype)            # O(TQ*D) VPU work
    k = k_ref[0]
    v = v_ref[0]

    # scores[r, c] = sum_d q[r, d] * k[c, d] — contract over D, no explicit k.T.
    scores = lax.dot_general(
        q, k,
        dimension_numbers=(((1,), (1,)), ((), ())),
        preferred_element_type=jnp.float32,
    )                                                         # (TQ, L) f32
    if not fold_scale_into_q:
        scores = scores * jnp.float32(scale)

    q_start = pl.program_id(1) * tq                           # global row offset
    scores = _causal_mask(scores, q_start, 0)

    # Softmax over kv axis, f32 math, EUP approximate reciprocal (free slot).
    m = jnp.max(scores, axis=-1, keepdims=True)
    e = jnp.exp(scores - m)
    denom = jnp.sum(e, axis=-1, keepdims=True)
    inv = pl.reciprocal(denom, approx=True)

    # Materialize attention ONCE in the output dtype and reuse it for A@V:
    # collapses the chain of (TQ, L) f32 temporaries (scores -> e -> attn).
    attn = (e * inv).astype(attn_ref.dtype)
    attn_ref[0] = attn

    # TODO(synk): nn.Dropout(0.1) is identity here (inference); training dropout
    # would use pltpu.prng_seed / pltpu.prng_random_bits.

    ctx = jnp.dot(attn.astype(v.dtype), v, preferred_element_type=jnp.float32)
    ctx_ref[0] = ctx.astype(ctx_ref.dtype)


def _sdpa_ctx_kernel(q_ref, k_ref, v_ref, ctx_ref, *, scale, tq, tk):
    """Flash-style, context-only kernel: online softmax over kv chunks, skipping
    kv chunks that are entirely above the causal diagonal for this q tile."""
    i = pl.program_id(1)
    q_start = i * tq
    dv = ctx_ref.shape[-1]

    fold_scale_into_q = q_ref.dtype == jnp.float32
    q = q_ref[0]
    if fold_scale_into_q:
        q = q * jnp.asarray(scale, dtype=q.dtype)

    # Only kv chunks whose first column index is <= the last query row of this
    # tile contribute; the rest are fully masked and never touched.
    n_needed = (q_start + tq + tk - 1) // tk                  # cdiv(q_end, tk)

    m0 = jnp.full((tq, 1), _MASK_VALUE, dtype=jnp.float32)
    l0 = jnp.zeros((tq, 1), dtype=jnp.float32)
    acc0 = jnp.zeros((tq, dv), dtype=jnp.float32)

    def body(j, carry):
        m, l, acc = carry
        k_start = pl.multiple_of(j * tk, tk)
        k_chunk = k_ref[0, pl.ds(k_start, tk), :]             # (tk, D), resident VMEM
        v_chunk = v_ref[0, pl.ds(k_start, tk), :]             # (tk, Dv)

        s = lax.dot_general(
            q, k_chunk,
            dimension_numbers=(((1,), (1,)), ((), ())),
            preferred_element_type=jnp.float32,
        )                                                     # (TQ, tk) f32
        if not fold_scale_into_q:
            s = s * jnp.float32(scale)
        s = _causal_mask(s, q_start, j * tk)

        m_new = jnp.maximum(m, jnp.max(s, axis=-1, keepdims=True))
        alpha = jnp.exp(m - m_new)
        p = jnp.exp(s - m_new)
        l_new = alpha * l + jnp.sum(p, axis=-1, keepdims=True)
        acc_new = alpha * acc + jnp.dot(p.astype(v_chunk.dtype), v_chunk,
                                        preferred_element_type=jnp.float32)
        return m_new, l_new, acc_new

    m, l, acc = lax.fori_loop(0, n_needed, body, (m0, l0, acc0))
    ctx_ref[0] = (acc * pl.reciprocal(l, approx=True)).astype(ctx_ref.dtype)


def _pick_tile(seq_len, target):
    """Largest tile <= target that divides seq_len and is a multiple of 8."""
    if seq_len <= target:
        return seq_len
    for t in (512, 256, 128, 64, 32, 16, 8):
        if t <= target and seq_len % t == 0:
            return t
    # Fallback: single full-length tile (always correct; may need a larger
    # VMEM budget for awkward L — covered by _vmem_limit_bytes below).
    return seq_len


def _vmem_limit_bytes(estimate):
    """Only override the compiler default when the estimate exceeds it; never
    request more than 64 MiB (v7x physical VMEM per TensorCore)."""
    default = 32 * 1024 * 1024
    if estimate <= default:
        return None
    return min(int(estimate), 64 * 1024 * 1024)


def scaled_dot_product_attention(q, k, v, key_dim=None, *, q_tile=128,
                                 kv_chunk=512, return_attention=True,
                                 attn_dtype=None):
    """q: (B, L, D), k: (B, L, D), v: (B, L, Dv).

    Matches the PyTorch module: causal mask (requires Lq == Lk), returns
    (context, attention); torch's .squeeze(1) on context only has an effect
    when L == 1 (reproduced here).

    return_attention=False switches to a flash-style context-only kernel
    (attention is returned as None) — the fast path when the caller does not
    consume the attention matrix. attn_dtype (e.g. jnp.bfloat16) controls the
    attention output dtype to reduce HBM writeback.

    Note: for per-head GPT-2 attention (D = Dv = 64) the MXU is underfed; fuse
    heads into D/Dv >= 128 on the caller side if possible.
    """
    B, L, D = q.shape
    _, Lk, Dv = v.shape
    assert k.shape == (B, Lk, D) and Lk == L, "causal mask requires Lq == Lk"
    if key_dim is None:
        key_dim = D
    scale = 1.0 / (float(key_dim) ** 0.5)
    if attn_dtype is None:
        attn_dtype = q.dtype

    tq = _pick_tile(L, q_tile)
    n_q = L // tq
    itemsize = q.dtype.itemsize

    in_specs = [
        # q tile changes along the second grid axis.
        pl.BlockSpec((1, tq, D), lambda b, i: (b, i, 0)),
        # K / V block index ignores i => resident in VMEM across all q tiles
        # of a batch element (no re-DMA).
        pl.BlockSpec((1, L, D), lambda b, i: (b, 0, 0)),
        pl.BlockSpec((1, L, Dv), lambda b, i: (b, 0, 0)),
    ]
    ctx_spec = pl.BlockSpec((1, tq, Dv), lambda b, i: (b, i, 0))

    # Rough VMEM estimate: double-buffered blocks + resident K/V + f32 temporaries.
    base = (2 * (tq * D + tq * Dv) * itemsize
            + 2 * (L * D + L * Dv) * itemsize)

    if return_attention:
        attn_itemsize = jnp.dtype(attn_dtype).itemsize
        est = base + 2 * tq * L * attn_itemsize + 3 * tq * L * 4
        kernel = functools.partial(_sdpa_dense_kernel, scale=scale, tq=tq)
        ctx, attn = pl.pallas_call(
            kernel,
            out_shape=(
                jax.ShapeDtypeStruct((B, L, Dv), q.dtype),
                jax.ShapeDtypeStruct((B, L, L), attn_dtype),
            ),
            grid_spec=pltpu.PrefetchScalarGridSpec(
                num_scalar_prefetch=0,
                grid=(B, n_q),
                in_specs=in_specs,
                out_specs=[
                    ctx_spec,
                    pl.BlockSpec((1, tq, L), lambda b, i: (b, i, 0)),
                ],
            ),
            compiler_params=pltpu.CompilerParams(
                dimension_semantics=("parallel", "parallel"),
                vmem_limit_bytes=_vmem_limit_bytes(est),
            ),
        )(q, k, v)
    else:
        tk = _pick_tile(L, kv_chunk)
        est = base + 4 * tq * max(tk, Dv) * 4
        kernel = functools.partial(_sdpa_ctx_kernel, scale=scale, tq=tq, tk=tk)
        ctx = pl.pallas_call(
            kernel,
            out_shape=jax.ShapeDtypeStruct((B, L, Dv), q.dtype),
            grid_spec=pltpu.PrefetchScalarGridSpec(
                num_scalar_prefetch=0,
                grid=(B, n_q),
                in_specs=in_specs,
                out_specs=ctx_spec,
            ),
            compiler_params=pltpu.CompilerParams(
                dimension_semantics=("parallel", "parallel"),
                vmem_limit_bytes=_vmem_limit_bytes(est),
            ),
        )(q, k, v)
        attn = None

    if ctx.shape[1] == 1:  # mirror torch's .squeeze(1)
        ctx = jnp.squeeze(ctx, axis=1)
    return ctx, attn


def _reference(q, k, v, key_dim):
    temperature = float(key_dim) ** 0.5
    scores = jnp.einsum("bqd,bkd->bqk", q, k,
                        precision=lax.Precision.HIGHEST) / temperature
    L = scores.shape[1]
    mask = jnp.triu(jnp.ones((L, L), bool), k=1)
    scores = jnp.where(mask[None], -jnp.inf, scores)
    attn = jax.nn.softmax(scores, axis=-1)
    ctx = jnp.einsum("bqk,bkd->bqd", attn, v, precision=lax.Precision.HIGHEST)
    return ctx, attn


if __name__ == "__main__":
    key = jax.random.PRNGKey(0)

    # Test 1: small shape, single q tile per batch element, full semantics.
    B, L, D, Dv = 2, 8, 32, 32
    kq, kk, kv = jax.random.split(key, 3)
    q = jax.random.normal(kq, (B, L, D), dtype=jnp.float32)
    k = jax.random.normal(kk, (B, L, D), dtype=jnp.float32)
    v = jax.random.normal(kv, (B, L, Dv), dtype=jnp.float32)

    ctx, attn = scaled_dot_product_attention(q, k, v, key_dim=D)
    jax.block_until_ready((ctx, attn))
    ctx_ref, attn_ref = _reference(q, k, v, D)
    assert jnp.allclose(ctx, ctx_ref, atol=2e-3, rtol=2e-3)
    assert jnp.allclose(attn, attn_ref, atol=2e-3, rtol=2e-3)

    # Test 2: force query-axis tiling (TQ < L) to exercise the global-row mask.
    B2, L2 = 2, 16
    kq2, kk2, kv2 = jax.random.split(jax.random.PRNGKey(1), 3)
    q2 = jax.random.normal(kq2, (B2, L2, D), dtype=jnp.float32)
    k2 = jax.random.normal(kk2, (B2, L2, D), dtype=jnp.float32)
    v2 = jax.random.normal(kv2, (B2, L2, Dv), dtype=jnp.float32)

    ctx2, attn2 = scaled_dot_product_attention(q2, k2, v2, key_dim=D, q_tile=8)
    jax.block_until_ready((ctx2, attn2))
    ctx2_ref, attn2_ref = _reference(q2, k2, v2, D)
    assert jnp.allclose(ctx2, ctx2_ref, atol=2e-3, rtol=2e-3)
    assert jnp.allclose(attn2, attn2_ref, atol=2e-3, rtol=2e-3)

    # Test 3: context-only flash path with causal kv-chunk skipping.
    ctx3, attn3 = scaled_dot_product_attention(
        q2, k2, v2, key_dim=D, q_tile=8, kv_chunk=8, return_attention=False)
    jax.block_until_ready(ctx3)
    assert attn3 is None
    assert jnp.allclose(ctx3, ctx2_ref, atol=2e-3, rtol=2e-3)

    # Test 4: bf16 attention output (halves HBM writeback of the (B, L, L) tensor).
    ctx4, attn4 = scaled_dot_product_attention(
        q2, k2, v2, key_dim=D, attn_dtype=jnp.bfloat16)
    jax.block_until_ready((ctx4, attn4))
    assert jnp.allclose(attn4.astype(jnp.float32), attn2_ref, atol=2e-2, rtol=2e-2)
    assert jnp.allclose(ctx4, ctx2_ref, atol=1e-1, rtol=1e-1)

    print("KERNEL_OK")
</pallas_src>

<mosaic_0001>
module attributes {stable_mosaic.version = 11 : i64} {
  func.func @_sdpa_dense_kernel(%arg0: i32, %arg1: i32, %arg2: memref<1x8x32xf32, #tpu.memory_space<vmem>>, %arg3: memref<1x8x32xf32, #tpu.memory_space<vmem>>, %arg4: memref<1x8x32xf32, #tpu.memory_space<vmem>>, %arg5: memref<1x8x32xf32, #tpu.memory_space<vmem>>, %arg6: memref<1x8x8xf32, #tpu.memory_space<vmem>>) attributes {dimension_semantics = [#tpu.dimension_semantics<parallel>, #tpu.dimension_semantics<parallel>], iteration_bounds = array<i64: 2, 1>, scalar_prefetch = 0 : i64, scratch_operands = 0 : i64, tpu.core_type = #tpu.core_type<tc>, window_params = [{transform_indices = @transform_0, window_bounds = array<i64: 1, 8, 32>}, {transform_indices = @transform_1, window_bounds = array<i64: 1, 8, 32>}, {transform_indices = @transform_2, window_bounds = array<i64: 1, 8, 32>}, {transform_indices = @transform_3, window_bounds = array<i64: 1, 8, 32>}, {transform_indices = @transform_4, window_bounds = array<i64: 1, 8, 8>}]} {
    %c0 = arith.constant 0 : index
    %c0_0 = arith.constant 0 : index
    %c0_1 = arith.constant 0 : index
    %0 = vector.load %arg2[%c0, %c0_0, %c0_1] : memref<1x8x32xf32, #tpu.memory_space<vmem>>, vector<1x8x32xf32>
    %1 = vector.shape_cast %0 : vector<1x8x32xf32> to vector<8x32xf32>
    %cst = arith.constant 0.176776692 : f32
    %2 = vector.broadcast %cst : f32 to vector<8x32xf32>
    %3 = arith.mulf %1, %2 : vector<8x32xf32>
    %c0_2 = arith.constant 0 : index
    %c0_3 = arith.constant 0 : index
    %c0_4 = arith.constant 0 : index
    %4 = vector.load %arg3[%c0_2, %c0_3, %c0_4] : memref<1x8x32xf32, #tpu.memory_space<vmem>>, vector<1x8x32xf32>
    %5 = vector.shape_cast %4 : vector<1x8x32xf32> to vector<8x32xf32>
    %c0_5 = arith.constant 0 : index
    %c0_6 = arith.constant 0 : index
    %c0_7 = arith.constant 0 : index
    %6 = vector.load %arg4[%c0_5, %c0_6, %c0_7] : memref<1x8x32xf32, #tpu.memory_space<vmem>>, vector<1x8x32xf32>
    %7 = vector.shape_cast %6 : vector<1x8x32xf32> to vector<8x32xf32>
    %cst_8 = arith.constant dense<0.000000e+00> : vector<8x8xf32>
    %8 = tpu.matmul %3, %5, %cst_8 {dimension_numbers = #tpu.dot_dimension_numbers<[1], [1], [0], [0], [0, 0, 1, 0], [], []>} : vector<8x32xf32>, vector<8x32xf32>, vector<8x8xf32> -> vector<8x8xf32>
    %c8_i32 = arith.constant 8 : i32
    %9 = arith.muli %arg1, %c8_i32 : i32
    %10 = tpu.iota {dimensions = array<i32: 0>} : vector<8x8xi32>
    %11 = vector.broadcast %9 : i32 to vector<8x8xi32>
    %12 = arith.addi %11, %10 : vector<8x8xi32>
    %13 = tpu.iota {dimensions = array<i32: 1>} : vector<8x8xi32>
    %c0_i32 = arith.constant 0 : i32
    %14 = vector.broadcast %c0_i32 : i32 to vector<8x8xi32>
    %15 = arith.addi %14, %13 : vector<8x8xi32>
    %16 = arith.cmpi sgt, %15, %12 : vector<8x8xi32>
    %cst_9 = arith.constant -2.38197633E+38 : f32
    %17 = vector.broadcast %cst_9 : f32 to vector<8x8xf32>
    %18 = arith.select %16, %17, %8 : vector<8x8xi1>, vector<8x8xf32>
    %cst_10 = arith.constant dense<0xFF800000> : vector<8xf32>
    %19 = vector.multi_reduction <maximumf>, %18, %cst_10 [1] : vector<8x8xf32> to vector<8xf32>
    %20 = vector.shape_cast %19 : vector<8xf32> to vector<8x1xf32>
    %21 = vector.broadcast %20 : vector<8x1xf32> to vector<8x8xf32>
    %22 = arith.subf %18, %21 : vector<8x8xf32>
    %23 = math.exp %22 : vector<8x8xf32>
    %cst_11 = arith.constant dense<0.000000e+00> : vector<8xf32>
    %24 = vector.multi_reduction <add>, %23, %cst_11 [1] : vector<8x8xf32> to vector<8xf32>
    %25 = vector.shape_cast %24 : vector<8xf32> to vector<8x1xf32>
    %26 = tpu.reciprocal %25 {approx = true} : vector<8x1xf32> -> vector<8x1xf32>
    %27 = vector.broadcast %26 : vector<8x1xf32> to vector<8x8xf32>
    %28 = arith.mulf %23, %27 : vector<8x8xf32>
    %c0_12 = arith.constant 0 : index
    %c0_13 = arith.constant 0 : index
    %c0_14 = arith.constant 0 : index
    %29 = vector.load %arg6[%c0_12, %c0_13, %c0_14] : memref<1x8x8xf32, #tpu.memory_space<vmem>>, vector<1x8x8xf32>
    %30 = vector.shape_cast %29 : vector<1x8x8xf32> to vector<8x8xf32>
    %31 = vector.shape_cast %28 : vector<8x8xf32> to vector<1x8x8xf32>
    tpu.vector_store %arg6[%c0_12, %c0_13, %c0_14], %31 {strides = array<i32>} : memref<1x8x8xf32, #tpu.memory_space<vmem>>, vector<1x8x8xf32>,
    %cst_15 = arith.constant dense<0.000000e+00> : vector<8x32xf32>
    %32 = tpu.matmul %28, %7, %cst_15 {dimension_numbers = #tpu.dot_dimension_numbers<[1], [0], [0], [1], [0, 0, 1, 1], [], []>} : vector<8x8xf32>, vector<8x32xf32>, vector<8x32xf32> -> vector<8x32xf32>
    %c0_16 = arith.constant 0 : index
    %c0_17 = arith.constant 0 : index
    %c0_18 = arith.constant 0 : index
    %33 = vector.load %arg5[%c0_16, %c0_17, %c0_18] : memref<1x8x32xf32, #tpu.memory_space<vmem>>, vector<1x8x32xf32>
    %34 = vector.shape_cast %33 : vector<1x8x32xf32> to vector<8x32xf32>
    %35 = vector.shape_cast %32 : vector<8x32xf32> to vector<1x8x32xf32>
    tpu.vector_store %arg5[%c0_16, %c0_17, %c0_18], %35 {strides = array<i32>} : memref<1x8x32xf32, #tpu.memory_space<vmem>>, vector<1x8x32xf32>,
    return
  }
  func.func @transform_0(%arg0: i32, %arg1: i32) -> (i32, i32, i32) {
    %c0_i32 = arith.constant 0 : i32
    %c0_i32_0 = arith.constant 0 : i32
    return %arg0, %arg1, %c0_i32 : i32, i32, i32
  }
  func.func @transform_1(%arg0: i32, %arg1: i32) -> (i32, i32, i32) {
    %c0_i32 = arith.constant 0 : i32
    %c0_i32_0 = arith.constant 0 : i32
    %c0_i32_1 = arith.constant 0 : i32
    return %arg0, %c0_i32, %c0_i32_0 : i32, i32, i32
  }
  func.func @transform_2(%arg0: i32, %arg1: i32) -> (i32, i32, i32) {
    %c0_i32 = arith.constant 0 : i32
    %c0_i32_0 = arith.constant 0 : i32
    %c0_i32_1 = arith.constant 0 : i32
    return %arg0, %c0_i32, %c0_i32_0 : i32, i32, i32
  }
  func.func @transform_3(%arg0: i32, %arg1: i32) -> (i32, i32, i32) {
    %c0_i32 = arith.constant 0 : i32
    %c0_i32_0 = arith.constant 0 : i32
    return %arg0, %arg1, %c0_i32 : i32, i32, i32
  }
  func.func @transform_4(%arg0: i32, %arg1: i32) -> (i32, i32, i32) {
    %c0_i32 = arith.constant 0 : i32
    %c0_i32_0 = arith.constant 0 : i32
    return %arg0, %arg1, %c0_i32 : i32, i32, i32
  }
}

</mosaic_0001>

<llo_original>
// kernel: tpu_custom_call.1
$region0: #{tpu_custom_call.1}
  #allocation0 [shape = 'u32[]', space=smem, size = 0x4, offset = 0x4, fixed_abs, tag = 'smem constant byte address 0x4 - core index']
  #allocation1 [shape = 'u32[144,128]{1,0:T(1,128)}', space=vmem, size = 0x12000, scoped, tag = 'internal scratch']
  %s0 = inlined_call_operand.hbm [shape: f32[2,8,32], index: 0, kind: input, shape index: {}]
  %s1 = inlined_call_operand.hbm [shape: f32[2,8,32], index: 1, kind: input, shape index: {}]
  %s2 = inlined_call_operand.hbm [shape: f32[2,8,32], index: 2, kind: input, shape index: {}]
  %s3 = inlined_call_operand.hbm [shape: f32[2,8,32], index: 3, kind: output, shape index: {0}]
  %s4 = inlined_call_operand.hbm [shape: f32[2,8,8], index: 4, kind: output, shape index: {1}]
  %5 = xla_tuple %s3, %s4
  %s6 = sld [smem:[#allocation0]]
  $region65: #{tpu_custom_call.1} parent=0
    _
  %s8 = ssub.s32 1, %s6
  %s9 = scalar_select 0, %s8, %s6
  $region1: #{tpu_custom_call.1} parent=0
    #allocation2 [shape = 'u8[8192]{0}', space=vmem, size = 0x2000, scoped, tag = 'input window, operand 0']
    #allocation3 [shape = 's32[2]{0}', space=sflag, size = 0x8, scoped, tag = 'scoped memory for tpu_custom_call.1']
    #allocation4 [shape = 's32[2]{0}', space=sflag, size = 0x8, scoped, tag = 'scoped memory for tpu_custom_call.1']
    #allocation5 [shape = 'u8[8192]{0}', space=vmem, size = 0x2000, scoped, tag = 'input window, operand 1']
    #allocation6 [shape = 's32[2]{0}', space=sflag, size = 0x8, scoped, tag = 'scoped memory for tpu_custom_call.1']
    #allocation7 [shape = 'u8[8192]{0}', space=vmem, size = 0x2000, scoped, tag = 'input window, operand 2']
    #allocation8 [shape = 'u8[8192]{0}', space=vmem, size = 0x2000, scoped, tag = 'output window, operand 0']
    #allocation9 [shape = 'u8[8192]{0}', space=vmem, size = 0x2000, scoped, tag = 'output window, operand 1']
    #allocation10 [shape = 's32[2]{0}', space=sflag, size = 0x8, scoped, tag = 'scoped memory for tpu_custom_call.1']
    %10 = vsyncpa [#allocation3], 0
    %s11 = scalar_lea.sflag [#allocation3], 1
    %12 = vsyncpa %s11, 0
    %13 = vsyncpa [#allocation6], 0
    %s14 = scalar_lea.sflag [#allocation6], 1
    %15 = vsyncpa %s14, 0
    %16 = vsyncpa [#allocation4], 0
    %s17 = scalar_lea.sflag [#allocation4], 1
    %18 = vsyncpa %s17, 0
    %19 = vsyncpa [#allocation10], 0
    %s20 = scalar_lea.sflag [#allocation10], 1
    %21 = vsyncpa %s20, 0
    loop: start=0, step=1, limit=4
    $region2: #{tpu_custom_call.1} parent=1 // loop_pre_header
      _
    $region3: #{tpu_custom_call.1} parent=1 // loop_header
      %s23 = sphi 0, %s27
      %p24 = scmp.ge.s32.totalorder %s23, 4
      %s30 = sphi 0, %s42
      %s31 = sphi 0, %s38
      %s32 = sphi 0, %s30
      %s33 = sphi 0, %s31
      %s34 = sphi 0, %s32
      %s35 = sphi 0, %s33
      %s47 = sphi 0, %s49
      %s50 = sphi 0, %s47
      %s51 = sphi 0, %s50
      %s67 = sphi 0, %s51
      %s73 = sphi 0, %s75
      %s76 = sphi 0, %s73
      %s77 = sphi 0, %s76
      %s93 = sphi 0, %s77
      %s99 = sphi 0, %s101
      %s102 = sphi 0, %s99
      %s103 = sphi 0, %s102
      %s119 = sphi 0, %s103
      %s127 = sphi 0, %s129
      %s130 = sphi 0, %s127
      %s131 = sphi 0, %s130
      %s147 = sphi 0, %s131
      %s155 = sphi 0, %s157
      %s158 = sphi 0, %s155
      %s159 = sphi 0, %s158
      %s175 = sphi 0, %s159
    $region4: #{tpu_custom_call.1} parent=1 // loop_header_branch
      %26 = sbr.rel (%p24) target = $region8
    $region5: #{tpu_custom_call.1} parent=1 // loop_body
      %s28 = ssub.s32 %s23, 1
      %s29 = ssub.s32 %s23, 2
      %s36 = sadd.s32 1, %s31
      %p37 = scmp.ge.s32.totalorder %s36, 1
      %s38 = scalar_select %p37, 0, %s36
      %s39 = sadd.s32 1, %s30
      %s40 = scalar_select %p37, %s39, %s30
      %p41 = scmp.ge.s32.totalorder %s40, 2
      %s42 = scalar_select %p41, 0, %s40
      %s43 = ssub.s32 %s30, %s42
      %s44 = ssub.s32 %s31, %s38
      %s45 = sor.u32 %s43, %s44
      %p46 = scmp.eq.s32.totalorder %s45, 0
      %s48 = sadd.s32 %s47, 1
      %s49 = scalar_select %p46, %s47, %s48
      %p52 = pneg %p46
      %p53 = scmp.eq.s32.totalorder %s23, 1
      %p54 = por %p52, %p53
      %p55 = scmp.ne.s32.totalorder %s47, %s50
      %p56 = scmp.eq.s32.totalorder %s23, 0
      %p57 = por %p55, %p56
      %p58 = scmp.ne.s32.totalorder %s47, %s50
      %p59 = scmp.eq.s32.totalorder %s28, 1
      %p60 = por %p58, %p59
      %p61 = scmp.ne.s32.totalorder %s50, %s51
      %p62 = scmp.eq.s32.totalorder %s28, 0
      %p63 = por %p61, %p62
      %p64 = scmp.ne.s32.totalorder %s50, %s51
      %p65 = scmp.eq.s32.totalorder %s29, 1
      %p66 = por %p64, %p65
      %p68 = scmp.ne.s32.totalorder %s51, %s67
      %p69 = scmp.eq.s32.totalorder %s29, 0
      %p70 = por %p68, %p69
      %s71 = ssub.s32 %s30, %s42
      %p72 = scmp.eq.s32.totalorder %s71, 0
      %s74 = sadd.s32 %s73, 1
      %s75 = scalar_select %p72, %s73, %s74
      %p78 = pneg %p72
      %p79 = scmp.eq.s32.totalorder %s23, 1
      %p80 = por %p78, %p79
      %p81 = scmp.ne.s32.totalorder %s73, %s76
      %p82 = scmp.eq.s32.totalorder %s23, 0
      %p83 = por %p81, %p82
      %p84 = scmp.ne.s32.totalorder %s73, %s76
      %p85 = scmp.eq.s32.totalorder %s28, 1
      %p86 = por %p84, %p85
      %p87 = scmp.ne.s32.totalorder %s76, %s77
      %p88 = scmp.eq.s32.totalorder %s28, 0
      %p89 = por %p87, %p88
      %p90 = scmp.ne.s32.totalorder %s76, %s77
      %p91 = scmp.eq.s32.totalorder %s29, 1
      %p92 = por %p90, %p91
      %p94 = scmp.ne.s32.totalorder %s77, %s93
      %p95 = scmp.eq.s32.totalorder %s29, 0
      %p96 = por %p94, %p95
      %s97 = ssub.s32 %s30, %s42
      %p98 = scmp.eq.s32.totalorder %s97, 0
      %s100 = sadd.s32 %s99, 1
      %s101 = scalar_select %p98, %s99, %s100
      %p104 = pneg %p98
      %p105 = scmp.eq.s32.totalorder %s23, 1
      %p106 = por %p104, %p105
      %p107 = scmp.ne.s32.totalorder %s99, %s102
      %p108 = scmp.eq.s32.totalorder %s23, 0
      %p109 = por %p107, %p108
      %p110 = scmp.ne.s32.totalorder %s99, %s102
      %p111 = scmp.eq.s32.totalorder %s28, 1
      %p112 = por %p110, %p111
      %p113 = scmp.ne.s32.totalorder %s102, %s103
      %p114 = scmp.eq.s32.totalorder %s28, 0
      %p115 = por %p113, %p114
      %p116 = scmp.ne.s32.totalorder %s102, %s103
      %p117 = scmp.eq.s32.totalorder %s29, 1
      %p118 = por %p116, %p117
      %p120 = scmp.ne.s32.totalorder %s103, %s119
      %p121 = scmp.eq.s32.totalorder %s29, 0
      %p122 = por %p120, %p121
      %s123 = ssub.s32 %s30, %s42
      %s124 = ssub.s32 %s31, %s38
      %s125 = sor.u32 %s123, %s124
      %p126 = scmp.eq.s32.totalorder %s125, 0
      %s128 = sadd.s32 %s127, 1
      %s129 = scalar_select %p126, %s127, %s128
      %p132 = pneg %p126
      %p133 = scmp.eq.s32.totalorder %s23, 1
      %p134 = por %p132, %p133
      %p135 = scmp.ne.s32.totalorder %s127, %s130
      %p136 = scmp.eq.s32.totalorder %s23, 0
      %p137 = por %p135, %p136
      %p138 = scmp.ne.s32.totalorder %s127, %s130
      %p139 = scmp.eq.s32.totalorder %s28, 1
      %p140 = por %p138, %p139
      %p141 = scmp.ne.s32.totalorder %s130, %s131
      %p142 = scmp.eq.s32.totalorder %s28, 0
      %p143 = por %p141, %p142
      %p144 = scmp.ne.s32.totalorder %s130, %s131
      %p145 = scmp.eq.s32.totalorder %s29, 1
      %p146 = por %p144, %p145
      %p148 = scmp.ne.s32.totalorder %s131, %s147
      %p149 = scmp.eq.s32.totalorder %s29, 0
      %p150 = por %p148, %p149
      %s151 = ssub.s32 %s30, %s42
      %s152 = ssub.s32 %s31, %s38
      %s153 = sor.u32 %s151, %s152
      %p154 = scmp.eq.s32.totalorder %s153, 0
      %s156 = sadd.s32 %s155, 1
      %s157 = scalar_select %p154, %s155, %s156
      %p160 = pneg %p154
      %p161 = scmp.eq.s32.totalorder %s23, 1
      %p162 = por %p160, %p161
      %p163 = scmp.ne.s32.totalorder %s155, %s158
      %p164 = scmp.eq.s32.totalorder %s23, 0
      %p165 = por %p163, %p164
      %p166 = scmp.ne.s32.totalorder %s155, %s158
      %p167 = scmp.eq.s32.totalorder %s28, 1
      %p168 = por %p166, %p167
      %p169 = scmp.ne.s32.totalorder %s158, %s159
      %p170 = scmp.eq.s32.totalorder %s28, 0
      %p171 = por %p169, %p170
      %p172 = scmp.ne.s32.totalorder %s158, %s159
      %p173 = scmp.eq.s32.totalorder %s29, 1
      %p174 = por %p172, %p173
      %p176 = scmp.ne.s32.totalorder %s159, %s175
      %p177 = scmp.eq.s32.totalorder %s29, 0
      %p178 = por %p176, %p177
      %p179 = scmp.le.s32.totalorder 1, %s23
      %p180 = scmp.lt.s32.totalorder %s23, 3
      %p181 = pnand %p179, %p180
      %p182 = pneg %p181
      // Predicated region
      $region9: #{tpu_custom_call.1} parent=5 // pred_check
        _
      $region10: #{tpu_custom_call.1} parent=5 // pred_check_branch
        %184 = sbr.rel (%p181) target = $region12
      $region11: #{tpu_custom_call.1} parent=5 // pred_region
        %s185 = ssub.s32 %s23, 1
      $region12: #{tpu_custom_call.1} parent=5 // pred_fallthru
        _
      %p186 = scmp.lt.s32.totalorder %s23, 2
      // Predicated region
      $region13: #{tpu_custom_call.1} parent=5 // pred_check
        %p187 = pneg %p186
      $region14: #{tpu_custom_call.1} parent=5 // pred_check_branch
        %189 = sbr.rel (%p187) target = $region16
      $region15: #{tpu_custom_call.1} parent=5 // pred_region
        // Predicated region
        $region17: #{tpu_custom_call.1} parent=15 // pred_check
          %p190 = pneg %p57
        $region18: #{tpu_custom_call.1} parent=15 // pred_check_branch
          %192 = sbr.rel (%p190) target = $region20
        $region19: #{tpu_custom_call.1} parent=15 // pred_region
          %s193 = sand.u32 %s47, 1
          %s194 = scalar_lea.sflag [#allocation3], %s193
          %s195 = sand.u32 %s47, 1
          %s196 = smul.addr %s195, 8
          %s197 = scalar_lea.vmem [#allocation2], %s196
          %s199 = ssub.s32 128, 128
          %200 = vsyncadd %s194, %s199
          %s201 = sadd.s32 %s31, %s30
          %s202 = smul.addr %s201, 128
          %s203 = scalar_lea.hbm %s0, %s202
          %s205 = sshll.u32 %s197, 4
          %s206 = int_to_ptr.vmem [resolvable:$true] %s205
          %208 = dma.hbm_to_vmem [thread:$0]  %s203, 128, %s206, %s194
        $region20: #{tpu_custom_call.1} parent=15 // pred_fallthru
          _
        // Predicated region
        $region21: #{tpu_custom_call.1} parent=15 // pred_check
          %p209 = pneg %p83
        $region22: #{tpu_custom_call.1} parent=15 // pred_check_branch
          %211 = sbr.rel (%p209) target = $region24
        $region23: #{tpu_custom_call.1} parent=15 // pred_region
          %s212 = sand.u32 %s23, 1
          %s213 = scalar_lea.sflag [#allocation6], %s212
          %s214 = sand.u32 %s73, 1
          %s215 = smul.addr %s214, 8
          %s216 = scalar_lea.vmem [#allocation5], %s215
          %s218 = ssub.s32 128, 128
          %219 = vsyncadd %s213, %s218
          %s220 = smul.addr %s30, 128
          %s221 = scalar_lea.hbm %s1, %s220
          %s223 = sshll.u32 %s216, 4
          %s224 = int_to_ptr.vmem [resolvable:$true] %s223
          %226 = dma.hbm_to_vmem [thread:$0]  %s221, 128, %s224, %s213
        $region24: #{tpu_custom_call.1} parent=15 // pred_fallthru
          _
        // Predicated region
        $region25: #{tpu_custom_call.1} parent=15 // pred_check
          %p227 = pneg %p109
        $region26: #{tpu_custom_call.1} parent=15 // pred_check_branch
          %229 = sbr.rel (%p227) target = $region28
        $region27: #{tpu_custom_call.1} parent=15 // pred_region
          %s230 = sand.u32 %s23, 1
          %s231 = scalar_lea.sflag [#allocation6], %s230
          %s232 = sand.u32 %s99, 1
          %s233 = smul.addr %s232, 8
          %s234 = scalar_lea.vmem [#allocation7], %s233
          %s236 = ssub.s32 128, 128
          %237 = vsyncadd %s231, %s236
          %s238 = smul.addr %s30, 128
          %s239 = scalar_lea.hbm %s2, %s238
          %s241 = sshll.u32 %s234, 4
          %s242 = int_to_ptr.vmem [resolvable:$true] %s241
          %244 = dma.hbm_to_vmem [thread:$0]  %s239, 128, %s242, %s231
        $region28: #{tpu_custom_call.1} parent=15 // pred_fallthru
          _
      $region16: #{tpu_custom_call.1} parent=5 // pred_fallthru
        _
      %p245 = scmp.le.s32.totalorder 1, %s23
      %p246 = scmp.lt.s32.totalorder %s23, 3
      %p247 = pnand %p245, %p246
      %p248 = pneg %p247
      // Predicated region
      $region29: #{tpu_custom_call.1} parent=5 // pred_check
        _
      $region30: #{tpu_custom_call.1} parent=5 // pred_check_branch
        %250 = sbr.rel (%p247) target = $region32
      $region31: #{tpu_custom_call.1} parent=5 // pred_region
        %s251 = ssub.s32 %s23, 1
        %s252 = sand.u32 %s50, 1
        %s253 = scalar_lea.sflag [#allocation3], %s252
        %s254 = sand.u32 %s50, 1
        %s255 = smul.addr %s254, 8
        %s256 = scalar_lea.vmem [#allocation2], %s255
        // Predicated region
        $region33: #{tpu_custom_call.1} parent=31 // pred_check
          %p257 = pneg %p63
        $region34: #{tpu_custom_call.1} parent=31 // pred_check_branch
          %259 = sbr.rel (%p257) target = $region36
        $region35: #{tpu_custom_call.1} parent=31 // pred_region
          %260 = dma.done %s253, 128
        $region36: #{tpu_custom_call.1} parent=31 // pred_fallthru
          _
        %s261 = sand.u32 %s28, 1
        %s262 = scalar_lea.sflag [#allocation6], %s261
        %s263 = sand.u32 %s76, 1
        %s264 = smul.addr %s263, 8
        %s265 = scalar_lea.vmem [#allocation5], %s264
        // Predicated region
        $region37: #{tpu_custom_call.1} parent=31 // pred_check
          %p266 = pneg %p89
        $region38: #{tpu_custom_call.1} parent=31 // pred_check_branch
          %268 = sbr.rel (%p266) target = $region40
        $region39: #{tpu_custom_call.1} parent=31 // pred_region
          %269 = dma.done %s262, 128
        $region40: #{tpu_custom_call.1} parent=31 // pred_fallthru
          _
        %s270 = sand.u32 %s28, 1
        %s271 = scalar_lea.sflag [#allocation6], %s270
        %s272 = sand.u32 %s102, 1
        %s273 = smul.addr %s272, 8
        %s274 = scalar_lea.vmem [#allocation7], %s273
        // Predicated region
        $region41: #{tpu_custom_call.1} parent=31 // pred_check
          %p275 = pneg %p115
        $region42: #{tpu_custom_call.1} parent=31 // pred_check_branch
          %277 = sbr.rel (%p275) target = $region44
        $region43: #{tpu_custom_call.1} parent=31 // pred_region
          %278 = dma.done %s271, 128
        $region44: #{tpu_custom_call.1} parent=31 // pred_fallthru
          _
        %s279 = sand.u32 %s50, 1
        %s280 = scalar_lea.sflag [#allocation3], %s279
        %s281 = sand.u32 %s50, 1
        %s282 = smul.addr %s281, 8
        %s283 = scalar_lea.vmem [#allocation2], %s282
        %p284 = pneg %p63
        %p285 = pneg %p60
        %s286 = sand.u32 %s28, 1
        %s287 = scalar_lea.sflag [#allocation6], %s286
        %s288 = sand.u32 %s76, 1
        %s289 = smul.addr %s288, 8
        %s290 = scalar_lea.vmem [#allocation5], %s289
        %p291 = pneg %p89
        %p292 = pneg %p86
        %s293 = sand.u32 %s28, 1
        %s294 = scalar_lea.sflag [#allocation6], %s293
        %s295 = sand.u32 %s102, 1
        %s296 = smul.addr %s295, 8
        %s297 = scalar_lea.vmem [#allocation7], %s296
        %p298 = pneg %p115
        %p299 = pneg %p112
        %p300 = pneg %p143
        %p301 = pneg %p140
        %s302 = sand.u32 %s130, 1
        %s303 = scalar_lea.sflag [#allocation4], %s302
        %s304 = sand.u32 %s130, 1
        %s305 = smul.addr %s304, 8
        %s306 = scalar_lea.vmem [#allocation8], %s305
        %p307 = pneg %p171
        %p308 = pneg %p168
        %s309 = sand.u32 %s158, 1
        %s310 = scalar_lea.sflag [#allocation10], %s309
        %s311 = sand.u32 %s158, 1
        %s312 = smul.addr %s311, 8
        %s313 = scalar_lea.vmem [#allocation9], %s312
        %v314 = vld [vmem:[%s256] sm:$0xff]
        %v315 = vmul.f32 %v314, 0.17677669
        %v316 = vld [vmem:[%s265] sm:$0xff]
        %v317 = vld [vmem:[%s274] sm:$0xff]
        %vm318 = vcmask 261120
        %v320 = vsel %vm318, %v315, 0
        %v323 = vsel %vm318, %v316, 0
        %325 = vmatprep.subr.mxu0 0.0
        %326 = vmatpush1.xpose.msra.mxu0 %v323
        %327 = vmatprep.subr.mxu0 0.0
        %328 = vmatpush1.xpose.msra.mxu0 0.0
        %329 = vmatprep.subr.mxu0 0.0
        %330 = vmatpush1.xpose.msra.mxu0 0.0
        %331 = vmatprep.subr.mxu0 0.0
        %332 = vmatpush1.xpose.msra.mxu0 0.0
        %333 = vmatprep.subr.mxu0 0.0
        %334 = vmatpush1.xpose.msra.mxu0 0.0
        %335 = vmatprep.subr.mxu0 0.0
        %336 = vmatpush1.xpose.msra.mxu0 0.0
        %337 = vmatprep.subr.mxu0 0.0
        %338 = vmatpush1.xpose.msra.mxu0 0.0
        %339 = vmatprep.subr.mxu0 0.0
        %340 = vmatpush1.xpose.msra.mxu0 0.0
        %341 = vmatprep.subr.mxu0 0.0
        %342 = vmatpush1.xpose.msra.mxu0 0.0
        %343 = vmatprep.subr.mxu0 0.0
        %344 = vmatpush1.xpose.msra.mxu0 0.0
        %345 = vmatprep.subr.mxu0 0.0
        %346 = vmatpush1.xpose.msra.mxu0 0.0
        %347 = vmatprep.subr.mxu0 0.0
        %348 = vmatpush1.xpose.msra.mxu0 0.0
        %349 = vmatprep.subr.mxu0 0.0
        %350 = vmatpush1.xpose.msra.mxu0 0.0
        %351 = vmatprep.subr.mxu0 0.0
        %352 = vmatpush1.xpose.msra.mxu0 0.0
        %353 = vmatprep.subr.mxu0 0.0
        %354 = vmatpush1.xpose.msra.mxu0 0.0
        %355 = vmatprep.subr.mxu0 0.0
        %356 = vmatpush1.xpose.msra.mxu0 0.0
        %357 = vmatprep.subr.mxu0 0.0
        %358 = vmatpush1.xpose.msra.mxu0 0.0
        %359 = vmatprep.subr.mxu0 0.0
        %360 = vmatpush1.xpose.msra.mxu0 0.0
        %361 = vmatprep.subr.mxu0 0.0
        %362 = vmatpush1.xpose.msra.mxu0 0.0
        %363 = vmatprep.subr.mxu0 0.0
        %364 = vmatpush1.xpose.msra.mxu0 0.0
        %365 = vmatprep.subr.mxu0 0.0
        %366 = vmatpush1.xpose.msra.mxu0 0.0
        %367 = vmatprep.subr.mxu0 0.0
        %368 = vmatpush1.xpose.msra.mxu0 0.0
        %369 = vmatprep.subr.mxu0 0.0
        %370 = vmatpush1.xpose.msra.mxu0 0.0
        %371 = vmatprep.subr.mxu0 0.0
        %372 = vmatpush1.xpose.msra.mxu0 0.0
        %373 = vmatprep.subr.mxu0 0.0
        %374 = vmatpush1.xpose.msra.mxu0 0.0
        %375 = vmatprep.subr.mxu0 0.0
        %376 = vmatpush1.xpose.msra.mxu0 0.0
        %377 = vmatprep.subr.mxu0 0.0
        %378 = vmatpush1.xpose.msra.mxu0 0.0
        %379 = vmatprep.subr.mxu0 0.0
        %380 = vmatpush1.xpose.msra.mxu0 0.0
        %381 = vmatprep.subr.mxu0 0.0
        %382 = vmatpush1.xpose.msra.mxu0 0.0
        %383 = vmatprep.subr.mxu0 0.0
        %384 = vmatpush1.xpose.msra.mxu0 0.0
        %385 = vmatprep.subr.mxu0 0.0
        %386 = vmatpush1.xpose.msra.mxu0 0.0
        %387 = vmatprep.subr.mxu0 0.0
        %388 = vmatpush1.xpose.msra.mxu0 0.0
        %389 = vmatprep.mubr.f32.mxu0 0.0
        %390 = vmatmul.mubr.f32.gmra.mrb[0].mxu0 %v320
        %v391 = vpop.f32.mrb[0].mxu0
        %v392 = vadd.f32 0.0, %v391
        %v393 = vpop.f32.mrb[0].mxu0
        %394 = vdwg.mxu0
        %s395 = smul.u32 %s33, 8
        %v396 = vlaneseq
        %v397 = vshrl.u32 %v396, 7
        %v398 = vstv %s395
        %v399 = vadd.s32 %v398, %v397
        %v400 = vlaneseq
        %v401 = vand.u32 %v400, 127
        %vm402 = vcmp.gt.s32.totalorder %v401, %v399
        %v403 = vsel %vm402, -2.3819763e+38, %v392
        %vm404 = vcmask 64512
        %v405 = vsel %vm404, %v403, -inf
        %406 = vmax.xlane.f32.xlu0 %v405
        %v407 = vpop.xlane.xlu0 %406
        %v408 = vsub.f32 %v403, %v407
        %v409 = vmul.f32 %v408, 1.442695
        %v410 = vpow.pop %v409
        %v411 = vsel %vm404, %v410, 0.0
        %412 = vadd.xlane.f32.xlu0 %v411
        %v413 = vpop.xlane.xlu0 %412
        %v414 = vrcp.pop %v413
        %v415 = vmul.f32 %v410, %v414
        %416 = vst.msk [vmem:[%s313] sm:$0xff] %vm404, %v415
        %v418 = vsel %vm404, %v415, 0
        %420 = vmatprep.subr.mxu0 0.0
        %421 = vmatpush1.msra.mxu0 %v317
        %422 = vmatprep.subr.mxu0 0.0
        %423 = vmatpush1.msra.mxu0 0.0
        %424 = vmatprep.subr.mxu0 0.0
        %425 = vmatpush1.msra.mxu0 0.0
        %426 = vmatprep.subr.mxu0 0.0
        %427 = vmatpush1.msra.mxu0 0.0
        %428 = vmatprep.subr.mxu0 0.0
        %429 = vmatpush1.msra.mxu0 0.0
        %430 = vmatprep.subr.mxu0 0.0
        %431 = vmatpush1.msra.mxu0 0.0
        %432 = vmatprep.subr.mxu0 0.0
        %433 = vmatpush1.msra.mxu0 0.0
        %434 = vmatprep.subr.mxu0 0.0
        %435 = vmatpush1.msra.mxu0 0.0
        %436 = vmatprep.subr.mxu0 0.0
        %437 = vmatpush1.msra.mxu0 0.0
        %438 = vmatprep.subr.mxu0 0.0
        %439 = vmatpush1.msra.mxu0 0.0
        %440 = vmatprep.subr.mxu0 0.0
        %441 = vmatpush1.msra.mxu0 0.0
        %442 = vmatprep.subr.mxu0 0.0
        %443 = vmatpush1.msra.mxu0 0.0
        %444 = vmatprep.subr.mxu0 0.0
        %445 = vmatpush1.msra.mxu0 0.0
        %446 = vmatprep.subr.mxu0 0.0
        %447 = vmatpush1.msra.mxu0 0.0
        %448 = vmatprep.subr.mxu0 0.0
        %449 = vmatpush1.msra.mxu0 0.0
        %450 = vmatprep.subr.mxu0 0.0
        %451 = vmatpush1.msra.mxu0 0.0
        %452 = vmatprep.subr.mxu0 0.0
        %453 = vmatpush1.msra.mxu0 0.0
        %454 = vmatprep.subr.mxu0 0.0
        %455 = vmatpush1.msra.mxu0 0.0
        %456 = vmatprep.subr.mxu0 0.0
        %457 = vmatpush1.msra.mxu0 0.0
        %458 = vmatprep.subr.mxu0 0.0
        %459 = vmatpush1.msra.mxu0 0.0
        %460 = vmatprep.subr.mxu0 0.0
        %461 = vmatpush1.msra.mxu0 0.0
        %462 = vmatprep.subr.mxu0 0.0
        %463 = vmatpush1.msra.mxu0 0.0
        %464 = vmatprep.subr.mxu0 0.0
        %465 = vmatpush1.msra.mxu0 0.0
        %466 = vmatprep.subr.mxu0 0.0
        %467 = vmatpush1.msra.mxu0 0.0
        %468 = vmatprep.subr.mxu0 0.0
        %469 = vmatpush1.msra.mxu0 0.0
        %470 = vmatprep.subr.mxu0 0.0
        %471 = vmatpush1.msra.mxu0 0.0
        %472 = vmatprep.subr.mxu0 0.0
        %473 = vmatpush1.msra.mxu0 0.0
        %474 = vmatprep.subr.mxu0 0.0
        %475 = vmatpush1.msra.mxu0 0.0
        %476 = vmatprep.subr.mxu0 0.0
        %477 = vmatpush1.msra.mxu0 0.0
        %478 = vmatprep.subr.mxu0 0.0
        %479 = vmatpush1.msra.mxu0 0.0
        %480 = vmatprep.subr.mxu0 0.0
        %481 = vmatpush1.msra.mxu0 0.0
        %482 = vmatprep.subr.mxu0 0.0
        %483 = vmatpush1.msra.mxu0 0.0
        %484 = vmatprep.mubr.f32.mxu0 0.0
        %485 = vmatmul.mubr.f32.gmra.mrb[0].mxu0 %v418
        %v486 = vpop.f32.mrb[0].mxu0
        %v487 = vadd.f32 0.0, %v486
        %v488 = vpop.f32.mrb[0].mxu0
        %489 = vdwg.mxu0
        %490 = vst.msk [vmem:[%s306] sm:$0xff] %vm318, %v487
        %s491 = sand.u32 %s130, 1
        %s492 = scalar_lea.sflag [#allocation4], %s491
        %s493 = sand.u32 %s130, 1
        %s494 = smul.addr %s493, 8
        %s495 = scalar_lea.vmem [#allocation8], %s494
        %s496 = sand.u32 %s158, 1
        %s497 = scalar_lea.sflag [#allocation10], %s496
        %s498 = sand.u32 %s158, 1
        %s499 = smul.addr %s498, 8
        %s500 = scalar_lea.vmem [#allocation9], %s499
        // Predicated region
        $region45: #{tpu_custom_call.1} parent=31 // pred_check
          %p501 = pneg %p140
        $region46: #{tpu_custom_call.1} parent=31 // pred_check_branch
          %503 = sbr.rel (%p501) target = $region48
        $region47: #{tpu_custom_call.1} parent=31 // pred_region
          %s505 = ssub.s32 128, 128
          %506 = vsyncadd %s492, %s505
          %s507 = sadd.s32 %s33, %s32
          %s508 = smul.addr %s507, 128
          %s509 = scalar_lea.hbm %s3, %s508
          %s511 = sshll.u32 %s495, 4
          %s512 = int_to_ptr.vmem [resolvable:$true] %s511
          %514 = dma.vmem_to_hbm [thread:$0]  %s512, 128, %s509, %s492
        $region48: #{tpu_custom_call.1} parent=31 // pred_fallthru
          _
        // Predicated region
        $region49: #{tpu_custom_call.1} parent=31 // pred_check
          %p515 = pneg %p168
        $region50: #{tpu_custom_call.1} parent=31 // pred_check_branch
          %517 = sbr.rel (%p515) target = $region52
        $region51: #{tpu_custom_call.1} parent=31 // pred_region
          %s519 = ssub.s32 128, 128
          %520 = vsyncadd %s497, %s519
          %s521 = sadd.s32 %s33, %s32
          %s522 = smul.addr %s521, 128
          %s523 = scalar_lea.hbm %s4, %s522
          %s525 = sshll.u32 %s500, 4
          %s526 = int_to_ptr.vmem [resolvable:$true] %s525
          %528 = dma.vmem_to_hbm [thread:$0]  %s526, 128, %s523, %s497
        $region52: #{tpu_custom_call.1} parent=31 // pred_fallthru
          _
      $region32: #{tpu_custom_call.1} parent=5 // pred_fallthru
        _
      %p529 = scmp.le.s32.totalorder 2, %s23
      // Predicated region
      $region53: #{tpu_custom_call.1} parent=5 // pred_check
        %p530 = pneg %p529
      $region54: #{tpu_custom_call.1} parent=5 // pred_check_branch
        %532 = sbr.rel (%p530) target = $region56
      $region55: #{tpu_custom_call.1} parent=5 // pred_region
        %s533 = ssub.s32 %s23, 2
        // Predicated region
        $region57: #{tpu_custom_call.1} parent=55 // pred_check
          %p534 = pneg %p146
        $region58: #{tpu_custom_call.1} parent=55 // pred_check_branch
          %536 = sbr.rel (%p534) target = $region60
        $region59: #{tpu_custom_call.1} parent=55 // pred_region
          %s537 = sand.u32 %s131, 1
          %s538 = scalar_lea.sflag [#allocation4], %s537
          %s539 = sand.u32 %s131, 1
          %s540 = smul.addr %s539, 8
          %s541 = scalar_lea.vmem [#allocation8], %s540
          %542 = dma.done %s538, 128
        $region60: #{tpu_custom_call.1} parent=55 // pred_fallthru
          _
        // Predicated region
        $region61: #{tpu_custom_call.1} parent=55 // pred_check
          %p543 = pneg %p174
        $region62: #{tpu_custom_call.1} parent=55 // pred_check_branch
          %545 = sbr.rel (%p543) target = $region64
        $region63: #{tpu_custom_call.1} parent=55 // pred_region
          %s546 = sand.u32 %s159, 1
          %s547 = scalar_lea.sflag [#allocation10], %s546
          %s548 = sand.u32 %s159, 1
          %s549 = smul.addr %s548, 8
          %s550 = scalar_lea.vmem [#allocation9], %s549
          %551 = dma.done %s547, 128
        $region64: #{tpu_custom_call.1} parent=55 // pred_fallthru
          _
      $region56: #{tpu_custom_call.1} parent=5 // pred_fallthru
        _
    $region6: #{tpu_custom_call.1} parent=1 // loop_footer
      %s27 = sadd.s32 1, %s23
    $region7: #{tpu_custom_call.1} parent=1 // loop_footer_branch
      %22 = sbr.rel target = $region3
    $region8: #{tpu_custom_call.1} parent=1 // loop_exit
      _
    %552 = vsyncpa [#allocation3], 1
    %s553 = scalar_lea.sflag [#allocation3], 1
    %554 = vsyncpa %s553, 1
    %555 = vsyncpa [#allocation6], 1
    %s556 = scalar_lea.sflag [#allocation6], 1
    %557 = vsyncpa %s556, 1
    %558 = vsyncpa [#allocation4], 1
    %s559 = scalar_lea.sflag [#allocation4], 1
    %560 = vsyncpa %s559, 1
    %561 = vsyncpa [#allocation10], 1
    %s562 = scalar_lea.sflag [#allocation10], 1
    %563 = vsyncpa %s562, 1

</llo_original>
